<compile_context>
chip_gen: v5e
topology: v5e:2x2
jax: 0.10.0
libtpu: 0.0.40
codegen_flags: <defaults>
</compile_context>

<pallas_src>
import functools

import jax
import jax.numpy as jnp
from jax import lax
from jax.experimental import pallas as pl
from jax.experimental.pallas import tpu as pltpu


# --------------------------------------------------------------------------
# Pallas kernel: complex contraction over in_channels for one (corner, mode
# tile) grid cell, on split real/imag f32 planes.
# --------------------------------------------------------------------------
def _spectral_mul_kernel(a_ref, w_ref, o_ref):
    """Block shapes (one grid cell = one corner r, one mode tile m):

      a_ref : (1, 2, Ci, B,  TM)   [re/im, in_ch, batch, modes]
      w_ref : (1, 2, Ci, Co, TM)   [re/im, in_ch, out_ch, modes]
      o_ref : (1, 2, B,  Co, TM)   [re/im, batch, out_ch, modes]

    Computes out[b, o, m] = sum_i a[b, i, m] * w[i, o, m] (complex).
    """
    _, _, Ci, B, TM = a_ref.shape
    Co = w_ref.shape[3]

    def body(i, carry):
        acc_re, acc_im = carry
        # Dynamic index on a leading (untiled) dim — cheap base-address offset.
        ar = a_ref[0, 0, i][:, None, :]          # (B, 1, TM)
        ai = a_ref[0, 1, i][:, None, :]          # (B, 1, TM)
        wr = w_ref[0, 0, i][None, :, :]          # (1, Co, TM)
        wi = w_ref[0, 1, i][None, :, :]          # (1, Co, TM)
        acc_re = acc_re + (ar * wr - ai * wi)    # (B, Co, TM)
        acc_im = acc_im + (ar * wi + ai * wr)
        return acc_re, acc_im

    zeros = jnp.zeros((B, Co, TM), jnp.float32)
    # Cap unroll: full unroll is fine at Ci=4 but blows the vreg file at Ci>=32.
    acc_re, acc_im = lax.fori_loop(0, Ci, body, (zeros, zeros),
                                   unroll=min(int(Ci), 8))

    o_ref[0, 0] = acc_re
    o_ref[0, 1] = acc_im


# --------------------------------------------------------------------------
# VMEM budgeting (generation-aware) and mode-tile selection.
# --------------------------------------------------------------------------
def _vmem_limit_bytes():
    """~75% of physical VMEM: ~96 MiB on v5e/v6e (128 MiB), ~48 MiB on v7x."""
    cap = None
    try:
        info = pltpu.get_tpu_info()
        for attr in ("vmem_capacity_bytes", "vmem_size_bytes", "vmem_bytes"):
            cap = getattr(info, attr, None)
            if cap:
                break
    except Exception:
        cap = None
    if not cap:
        cap = 64 * 1024 * 1024          # conservative fallback (v7x-sized)
    return max(16 << 20, min(int(cap * 0.75), 100 << 20))


def _pick_mode_tile(M, Ci, Co, B, budget_bytes):
    """Largest mode tile (multiple of 128, dividing M) fitting the VMEM budget.

    If M is not a multiple of 128 the block must cover the full extent
    (exempt from the (8,128) rule), so return M unchanged.
    """
    if M % 128 != 0:
        return M
    # Bytes per mode column, f32, re+im planes, inputs/outputs double-buffered.
    per_mode = 4 * 2 * 2 * (Ci * B + Ci * Co + B * Co)
    tm = (budget_bytes // max(per_mode, 1)) // 128 * 128
    tm = max(128, min(tm, M))
    while M % tm != 0:
        tm -= 128
    return tm


def _spectral_mul_pallas(a_packed, w_packed):
    """a_packed: (R,2,Ci,B,M) f32; w_packed: (R,2,Ci,Co,M) f32 -> (R,2,B,Co,M)."""
    R, _, Ci, B, M = a_packed.shape
    Co = w_packed.shape[3]

    vmem_limit = _vmem_limit_bytes()
    TM = _pick_mode_tile(M, Ci, Co, B, int(0.8 * vmem_limit))
    grid = (R, M // TM)

    a_spec = pl.BlockSpec((1, 2, Ci, B, TM), lambda r, m: (r, 0, 0, 0, m))
    w_spec = pl.BlockSpec((1, 2, Ci, Co, TM), lambda r, m: (r, 0, 0, 0, m))
    o_spec = pl.BlockSpec((1, 2, B, Co, TM), lambda r, m: (r, 0, 0, 0, m))

    return pl.pallas_call(
        _spectral_mul_kernel,
        out_shape=jax.ShapeDtypeStruct((R, 2, B, Co, M), jnp.float32),
        grid_spec=pltpu.PrefetchScalarGridSpec(
            num_scalar_prefetch=0,
            grid=grid,
            in_specs=[a_spec, w_spec],
            out_specs=o_spec,
        ),
        compiler_params=pltpu.CompilerParams(
            dimension_semantics=("parallel", "parallel"),
            vmem_limit_bytes=vmem_limit,
        ),
    )(a_packed, w_packed)


# --------------------------------------------------------------------------
# End-to-end forward (jitted): rfft -> Pallas complex mix -> irfft.
# --------------------------------------------------------------------------
@functools.partial(jax.jit, static_argnums=(2, 3))
def _spectral_conv2d_forward(x, w_packed, modes1, modes2):
    B, Ci, H, W = x.shape
    Co = w_packed.shape[3]
    m1, m2 = modes1, modes2
    M = m1 * m2
    Wf = W // 2 + 1

    if m1 > H or m2 > Wf:
        raise ValueError(
            f"modes ({m1},{m2}) exceed spectrum size ({H},{Wf})")

    # FFT stays in plain JAX (no Pallas FFT primitive).
    x_ft = jnp.fft.rfftn(x, axes=(2, 3))                # (B, Ci, H, Wf) c64

    # The two frequency corners used by the FNO layer.
    a_lo = x_ft[:, :, :m1, :m2]                         # (B, Ci, m1, m2)
    a_hi = x_ft[:, :, H - m1:, :m2]                     # (B, Ci, m1, m2)

    # Layout (R, 2, Ci, B, M): Ci on an untiled dim so the kernel's per-i index
    # is an address offset; flattened modes on the lane axis (unpadded).
    a = jnp.stack([a_lo, a_hi], axis=0)                 # (2, B, Ci, m1, m2)
    a = a.transpose(0, 2, 1, 3, 4).reshape(2, Ci, B, M)
    a_packed = jnp.stack(
        [jnp.real(a), jnp.imag(a)], axis=1).astype(jnp.float32)  # (2,2,Ci,B,M)

    out_packed = _spectral_mul_pallas(a_packed, w_packed)        # (2,2,B,Co,M)
    out = lax.complex(out_packed[:, 0], out_packed[:, 1])        # (2,B,Co,M)
    out = out.reshape(2, B, Co, m1, m2).astype(jnp.complex64)

    # Assemble the spectrum: corners + zero band (no zeros-then-scatter passes).
    if 2 * m1 <= H:
        mid = jnp.zeros((B, Co, H - 2 * m1, m2), dtype=jnp.complex64)
        spec = jnp.concatenate([out[0], mid, out[1]], axis=2)    # (B,Co,H,m2)
        out_ft = jnp.pad(spec, ((0, 0), (0, 0), (0, 0), (0, Wf - m2)))
    else:  # overlap case — match the scatter/overwrite semantics of PyTorch.
        out_ft = jnp.zeros((B, Co, H, Wf), dtype=jnp.complex64)
        out_ft = out_ft.at[:, :, :m1, :m2].set(out[0])
        out_ft = out_ft.at[:, :, H - m1:, :m2].set(out[1])

    y = jnp.fft.irfftn(out_ft, s=(H, W), axes=(2, 3))
    return y.astype(jnp.float32)                                 # (B, Co, H, W)


class SpectralConv2d:
    """JAX port of the PyTorch SpectralConv2d. Parameters init'd in-script."""

    def __init__(self, in_channels, out_channels, modes1, modes2, key):
        self.in_channels = in_channels
        self.out_channels = out_channels
        self.modes1 = modes1
        self.modes2 = modes2
        scale = 1.0 / (in_channels * out_channels)

        k1r, k1i, k2r, k2i = jax.random.split(key, 4)
        shape = (in_channels, out_channels, modes1, modes2)
        # torch.rand on cfloat -> uniform[0,1) independently for real and imag.
        self.w1_re = scale * jax.random.uniform(k1r, shape, dtype=jnp.float32)
        self.w1_im = scale * jax.random.uniform(k1i, shape, dtype=jnp.float32)
        self.w2_re = scale * jax.random.uniform(k2r, shape, dtype=jnp.float32)
        self.w2_im = scale * jax.random.uniform(k2i, shape, dtype=jnp.float32)

        # Kernel-layout weights, built once (call-invariant, no per-forward
        # stack/reshape/pad glue): (R=2, 2[re/im], Ci, Co, M).
        M = modes1 * modes2
        w_r = jnp.stack([self.w1_re, self.w2_re], axis=0).reshape(
            2, in_channels, out_channels, M)
        w_i = jnp.stack([self.w1_im, self.w2_im], axis=0).reshape(
            2, in_channels, out_channels, M)
        self.w_packed = jnp.stack([w_r, w_i], axis=1)

    def __call__(self, x):
        return _spectral_conv2d_forward(x, self.w_packed,
                                        self.modes1, self.modes2)


def _reference_forward(module: SpectralConv2d, x):
    """Pure-JAX reference (complex einsum), used only for a correctness check."""
    m1, m2 = module.modes1, module.modes2
    H, W = x.shape[-2], x.shape[-1]
    x_ft = jnp.fft.rfftn(x, axes=(2, 3))
    w1 = module.w1_re + 1j * module.w1_im
    w2 = module.w2_re + 1j * module.w2_im
    out_ft = jnp.zeros(
        (x.shape[0], module.out_channels, H, W // 2 + 1), dtype=jnp.complex64)
    out_ft = out_ft.at[:, :, :m1, :m2].set(
        jnp.einsum('bixy,ioxy->boxy', x_ft[:, :, :m1, :m2], w1))
    out_ft = out_ft.at[:, :, -m1:, :m2].set(
        jnp.einsum('bixy,ioxy->boxy', x_ft[:, :, -m1:, :m2], w2))
    return jnp.fft.irfftn(out_ft, s=(H, W), axes=(2, 3)).astype(jnp.float32)


if __name__ == "__main__":
    key = jax.random.PRNGKey(0)
    k_param, k_x = jax.random.split(key)

    B, Ci, Co, H, W = 2, 4, 4, 16, 16
    modes1, modes2 = 4, 4

    module = SpectralConv2d(Ci, Co, modes1, modes2, k_param)
    x = jax.random.normal(k_x, (B, Ci, H, W), dtype=jnp.float32)

    y = jax.block_until_ready(module(x))

    # Sanity check against the pure-JAX reference.
    y_ref = jax.block_until_ready(_reference_forward(module, x))
    assert y.shape == (B, Co, H, W)
    assert jnp.allclose(y, y_ref, atol=1e-4, rtol=1e-4), "mismatch vs reference"

    print("KERNEL_OK")
</pallas_src>

<mosaic_0001>
module attributes {stable_mosaic.version = 11 : i64} {
  func.func @_spectral_mul_kernel(%arg0: i32, %arg1: i32, %arg2: memref<1x2x4x2x16xf32, #tpu.memory_space<vmem>>, %arg3: memref<1x2x4x4x16xf32, #tpu.memory_space<vmem>>, %arg4: memref<1x2x2x4x16xf32, #tpu.memory_space<vmem>>) attributes {dimension_semantics = [#tpu.dimension_semantics<parallel>, #tpu.dimension_semantics<parallel>], iteration_bounds = array<i64: 2, 1>, scalar_prefetch = 0 : i64, scratch_operands = 0 : i64, tpu.core_type = #tpu.core_type<tc>, window_params = [{transform_indices = @transform_0, window_bounds = array<i64: 1, 2, 4, 2, 16>}, {transform_indices = @transform_1, window_bounds = array<i64: 1, 2, 4, 4, 16>}, {transform_indices = @transform_2, window_bounds = array<i64: 1, 2, 2, 4, 16>}]} {
    %cst = arith.constant 0.000000e+00 : f32
    %0 = vector.broadcast %cst : f32 to vector<2x4x16xf32>
    %c0_i32 = arith.constant 0 : i32
    %c0 = arith.constant 0 : index
    %c0_0 = arith.constant 0 : index
    %1 = arith.index_cast %c0_i32 : i32 to index
    %c0_1 = arith.constant 0 : index
    %c0_2 = arith.constant 0 : index
    %2 = vector.load %arg2[%c0, %c0_0, %1, %c0_1, %c0_2] : memref<1x2x4x2x16xf32, #tpu.memory_space<vmem>>, vector<1x1x1x2x16xf32>
    %3 = vector.shape_cast %2 : vector<1x1x1x2x16xf32> to vector<2x16xf32>
    %4 = vector.shape_cast %3 : vector<2x16xf32> to vector<2x1x16xf32>
    %c0_3 = arith.constant 0 : index
    %c1 = arith.constant 1 : index
    %5 = arith.index_cast %c0_i32 : i32 to index
    %c0_4 = arith.constant 0 : index
    %c0_5 = arith.constant 0 : index
    %6 = vector.load %arg2[%c0_3, %c1, %5, %c0_4, %c0_5] : memref<1x2x4x2x16xf32, #tpu.memory_space<vmem>>, vector<1x1x1x2x16xf32>
    %7 = vector.shape_cast %6 : vector<1x1x1x2x16xf32> to vector<2x16xf32>
    %8 = vector.shape_cast %7 : vector<2x16xf32> to vector<2x1x16xf32>
    %c0_6 = arith.constant 0 : index
    %c0_7 = arith.constant 0 : index
    %9 = arith.index_cast %c0_i32 : i32 to index
    %c0_8 = arith.constant 0 : index
    %c0_9 = arith.constant 0 : index
    %10 = vector.load %arg3[%c0_6, %c0_7, %9, %c0_8, %c0_9] : memref<1x2x4x4x16xf32, #tpu.memory_space<vmem>>, vector<1x1x1x4x16xf32>
    %11 = vector.shape_cast %10 : vector<1x1x1x4x16xf32> to vector<4x16xf32>
    %12 = vector.shape_cast %11 : vector<4x16xf32> to vector<1x4x16xf32>
    %c0_10 = arith.constant 0 : index
    %c1_11 = arith.constant 1 : index
    %13 = arith.index_cast %c0_i32 : i32 to index
    %c0_12 = arith.constant 0 : index
    %c0_13 = arith.constant 0 : index
    %14 = vector.load %arg3[%c0_10, %c1_11, %13, %c0_12, %c0_13] : memref<1x2x4x4x16xf32, #tpu.memory_space<vmem>>, vector<1x1x1x4x16xf32>
    %15 = vector.shape_cast %14 : vector<1x1x1x4x16xf32> to vector<4x16xf32>
    %16 = vector.shape_cast %15 : vector<4x16xf32> to vector<1x4x16xf32>
    %17 = vector.broadcast %4 : vector<2x1x16xf32> to vector<2x4x16xf32>
    %18 = vector.broadcast %12 : vector<1x4x16xf32> to vector<2x4x16xf32>
    %19 = arith.mulf %17, %18 : vector<2x4x16xf32>
    %20 = vector.broadcast %8 : vector<2x1x16xf32> to vector<2x4x16xf32>
    %21 = vector.broadcast %16 : vector<1x4x16xf32> to vector<2x4x16xf32>
    %22 = arith.mulf %20, %21 : vector<2x4x16xf32>
    %23 = arith.subf %19, %22 : vector<2x4x16xf32>
    %24 = arith.addf %0, %23 : vector<2x4x16xf32>
    %25 = vector.broadcast %4 : vector<2x1x16xf32> to vector<2x4x16xf32>
    %26 = vector.broadcast %16 : vector<1x4x16xf32> to vector<2x4x16xf32>
    %27 = arith.mulf %25, %26 : vector<2x4x16xf32>
    %28 = vector.broadcast %8 : vector<2x1x16xf32> to vector<2x4x16xf32>
    %29 = vector.broadcast %12 : vector<1x4x16xf32> to vector<2x4x16xf32>
    %30 = arith.mulf %28, %29 : vector<2x4x16xf32>
    %31 = arith.addf %27, %30 : vector<2x4x16xf32>
    %32 = arith.addf %0, %31 : vector<2x4x16xf32>
    %c1_i32 = arith.constant 1 : i32
    %c0_14 = arith.constant 0 : index
    %c0_15 = arith.constant 0 : index
    %33 = arith.index_cast %c1_i32 : i32 to index
    %c0_16 = arith.constant 0 : index
    %c0_17 = arith.constant 0 : index
    %34 = vector.load %arg2[%c0_14, %c0_15, %33, %c0_16, %c0_17] : memref<1x2x4x2x16xf32, #tpu.memory_space<vmem>>, vector<1x1x1x2x16xf32>
    %35 = vector.shape_cast %34 : vector<1x1x1x2x16xf32> to vector<2x16xf32>
    %36 = vector.shape_cast %35 : vector<2x16xf32> to vector<2x1x16xf32>
    %c0_18 = arith.constant 0 : index
    %c1_19 = arith.constant 1 : index
    %37 = arith.index_cast %c1_i32 : i32 to index
    %c0_20 = arith.constant 0 : index
    %c0_21 = arith.constant 0 : index
    %38 = vector.load %arg2[%c0_18, %c1_19, %37, %c0_20, %c0_21] : memref<1x2x4x2x16xf32, #tpu.memory_space<vmem>>, vector<1x1x1x2x16xf32>
    %39 = vector.shape_cast %38 : vector<1x1x1x2x16xf32> to vector<2x16xf32>
    %40 = vector.shape_cast %39 : vector<2x16xf32> to vector<2x1x16xf32>
    %c0_22 = arith.constant 0 : index
    %c0_23 = arith.constant 0 : index
    %41 = arith.index_cast %c1_i32 : i32 to index
    %c0_24 = arith.constant 0 : index
    %c0_25 = arith.constant 0 : index
    %42 = vector.load %arg3[%c0_22, %c0_23, %41, %c0_24, %c0_25] : memref<1x2x4x4x16xf32, #tpu.memory_space<vmem>>, vector<1x1x1x4x16xf32>
    %43 = vector.shape_cast %42 : vector<1x1x1x4x16xf32> to vector<4x16xf32>
    %44 = vector.shape_cast %43 : vector<4x16xf32> to vector<1x4x16xf32>
    %c0_26 = arith.constant 0 : index
    %c1_27 = arith.constant 1 : index
    %45 = arith.index_cast %c1_i32 : i32 to index
    %c0_28 = arith.constant 0 : index
    %c0_29 = arith.constant 0 : index
    %46 = vector.load %arg3[%c0_26, %c1_27, %45, %c0_28, %c0_29] : memref<1x2x4x4x16xf32, #tpu.memory_space<vmem>>, vector<1x1x1x4x16xf32>
    %47 = vector.shape_cast %46 : vector<1x1x1x4x16xf32> to vector<4x16xf32>
    %48 = vector.shape_cast %47 : vector<4x16xf32> to vector<1x4x16xf32>
    %49 = vector.broadcast %36 : vector<2x1x16xf32> to vector<2x4x16xf32>
    %50 = vector.broadcast %44 : vector<1x4x16xf32> to vector<2x4x16xf32>
    %51 = arith.mulf %49, %50 : vector<2x4x16xf32>
    %52 = vector.broadcast %40 : vector<2x1x16xf32> to vector<2x4x16xf32>
    %53 = vector.broadcast %48 : vector<1x4x16xf32> to vector<2x4x16xf32>
    %54 = arith.mulf %52, %53 : vector<2x4x16xf32>
    %55 = arith.subf %51, %54 : vector<2x4x16xf32>
    %56 = arith.addf %24, %55 : vector<2x4x16xf32>
    %57 = vector.broadcast %36 : vector<2x1x16xf32> to vector<2x4x16xf32>
    %58 = vector.broadcast %48 : vector<1x4x16xf32> to vector<2x4x16xf32>
    %59 = arith.mulf %57, %58 : vector<2x4x16xf32>
    %60 = vector.broadcast %40 : vector<2x1x16xf32> to vector<2x4x16xf32>
    %61 = vector.broadcast %44 : vector<1x4x16xf32> to vector<2x4x16xf32>
    %62 = arith.mulf %60, %61 : vector<2x4x16xf32>
    %63 = arith.addf %59, %62 : vector<2x4x16xf32>
    %64 = arith.addf %32, %63 : vector<2x4x16xf32>
    %c2_i32 = arith.constant 2 : i32
    %c0_30 = arith.constant 0 : index
    %c0_31 = arith.constant 0 : index
    %65 = arith.index_cast %c2_i32 : i32 to index
    %c0_32 = arith.constant 0 : index
    %c0_33 = arith.constant 0 : index
    %66 = vector.load %arg2[%c0_30, %c0_31, %65, %c0_32, %c0_33] : memref<1x2x4x2x16xf32, #tpu.memory_space<vmem>>, vector<1x1x1x2x16xf32>
    %67 = vector.shape_cast %66 : vector<1x1x1x2x16xf32> to vector<2x16xf32>
    %68 = vector.shape_cast %67 : vector<2x16xf32> to vector<2x1x16xf32>
    %c0_34 = arith.constant 0 : index
    %c1_35 = arith.constant 1 : index
    %69 = arith.index_cast %c2_i32 : i32 to index
    %c0_36 = arith.constant 0 : index
    %c0_37 = arith.constant 0 : index
    %70 = vector.load %arg2[%c0_34, %c1_35, %69, %c0_36, %c0_37] : memref<1x2x4x2x16xf32, #tpu.memory_space<vmem>>, vector<1x1x1x2x16xf32>
    %71 = vector.shape_cast %70 : vector<1x1x1x2x16xf32> to vector<2x16xf32>
    %72 = vector.shape_cast %71 : vector<2x16xf32> to vector<2x1x16xf32>
    %c0_38 = arith.constant 0 : index
    %c0_39 = arith.constant 0 : index
    %73 = arith.index_cast %c2_i32 : i32 to index
    %c0_40 = arith.constant 0 : index
    %c0_41 = arith.constant 0 : index
    %74 = vector.load %arg3[%c0_38, %c0_39, %73, %c0_40, %c0_41] : memref<1x2x4x4x16xf32, #tpu.memory_space<vmem>>, vector<1x1x1x4x16xf32>
    %75 = vector.shape_cast %74 : vector<1x1x1x4x16xf32> to vector<4x16xf32>
    %76 = vector.shape_cast %75 : vector<4x16xf32> to vector<1x4x16xf32>
    %c0_42 = arith.constant 0 : index
    %c1_43 = arith.constant 1 : index
    %77 = arith.index_cast %c2_i32 : i32 to index
    %c0_44 = arith.constant 0 : index
    %c0_45 = arith.constant 0 : index
    %78 = vector.load %arg3[%c0_42, %c1_43, %77, %c0_44, %c0_45] : memref<1x2x4x4x16xf32, #tpu.memory_space<vmem>>, vector<1x1x1x4x16xf32>
    %79 = vector.shape_cast %78 : vector<1x1x1x4x16xf32> to vector<4x16xf32>
    %80 = vector.shape_cast %79 : vector<4x16xf32> to vector<1x4x16xf32>
    %81 = vector.broadcast %68 : vector<2x1x16xf32> to vector<2x4x16xf32>
    %82 = vector.broadcast %76 : vector<1x4x16xf32> to vector<2x4x16xf32>
    %83 = arith.mulf %81, %82 : vector<2x4x16xf32>
    %84 = vector.broadcast %72 : vector<2x1x16xf32> to vector<2x4x16xf32>
    %85 = vector.broadcast %80 : vector<1x4x16xf32> to vector<2x4x16xf32>
    %86 = arith.mulf %84, %85 : vector<2x4x16xf32>
    %87 = arith.subf %83, %86 : vector<2x4x16xf32>
    %88 = arith.addf %56, %87 : vector<2x4x16xf32>
    %89 = vector.broadcast %68 : vector<2x1x16xf32> to vector<2x4x16xf32>
    %90 = vector.broadcast %80 : vector<1x4x16xf32> to vector<2x4x16xf32>
    %91 = arith.mulf %89, %90 : vector<2x4x16xf32>
    %92 = vector.broadcast %72 : vector<2x1x16xf32> to vector<2x4x16xf32>
    %93 = vector.broadcast %76 : vector<1x4x16xf32> to vector<2x4x16xf32>
    %94 = arith.mulf %92, %93 : vector<2x4x16xf32>
    %95 = arith.addf %91, %94 : vector<2x4x16xf32>
    %96 = arith.addf %64, %95 : vector<2x4x16xf32>
    %c3_i32 = arith.constant 3 : i32
    %c0_46 = arith.constant 0 : index
    %c0_47 = arith.constant 0 : index
    %97 = arith.index_cast %c3_i32 : i32 to index
    %c0_48 = arith.constant 0 : index
    %c0_49 = arith.constant 0 : index
    %98 = vector.load %arg2[%c0_46, %c0_47, %97, %c0_48, %c0_49] : memref<1x2x4x2x16xf32, #tpu.memory_space<vmem>>, vector<1x1x1x2x16xf32>
    %99 = vector.shape_cast %98 : vector<1x1x1x2x16xf32> to vector<2x16xf32>
    %100 = vector.shape_cast %99 : vector<2x16xf32> to vector<2x1x16xf32>
    %c0_50 = arith.constant 0 : index
    %c1_51 = arith.constant 1 : index
    %101 = arith.index_cast %c3_i32 : i32 to index
    %c0_52 = arith.constant 0 : index
    %c0_53 = arith.constant 0 : index
    %102 = vector.load %arg2[%c0_50, %c1_51, %101, %c0_52, %c0_53] : memref<1x2x4x2x16xf32, #tpu.memory_space<vmem>>, vector<1x1x1x2x16xf32>
    %103 = vector.shape_cast %102 : vector<1x1x1x2x16xf32> to vector<2x16xf32>
    %104 = vector.shape_cast %103 : vector<2x16xf32> to vector<2x1x16xf32>
    %c0_54 = arith.constant 0 : index
    %c0_55 = arith.constant 0 : index
    %105 = arith.index_cast %c3_i32 : i32 to index
    %c0_56 = arith.constant 0 : index
    %c0_57 = arith.constant 0 : index
    %106 = vector.load %arg3[%c0_54, %c0_55, %105, %c0_56, %c0_57] : memref<1x2x4x4x16xf32, #tpu.memory_space<vmem>>, vector<1x1x1x4x16xf32>
    %107 = vector.shape_cast %106 : vector<1x1x1x4x16xf32> to vector<4x16xf32>
    %108 = vector.shape_cast %107 : vector<4x16xf32> to vector<1x4x16xf32>
    %c0_58 = arith.constant 0 : index
    %c1_59 = arith.constant 1 : index
    %109 = arith.index_cast %c3_i32 : i32 to index
    %c0_60 = arith.constant 0 : index
    %c0_61 = arith.constant 0 : index
    %110 = vector.load %arg3[%c0_58, %c1_59, %109, %c0_60, %c0_61] : memref<1x2x4x4x16xf32, #tpu.memory_space<vmem>>, vector<1x1x1x4x16xf32>
    %111 = vector.shape_cast %110 : vector<1x1x1x4x16xf32> to vector<4x16xf32>
    %112 = vector.shape_cast %111 : vector<4x16xf32> to vector<1x4x16xf32>
    %113 = vector.broadcast %100 : vector<2x1x16xf32> to vector<2x4x16xf32>
    %114 = vector.broadcast %108 : vector<1x4x16xf32> to vector<2x4x16xf32>
    %115 = arith.mulf %113, %114 : vector<2x4x16xf32>
    %116 = vector.broadcast %104 : vector<2x1x16xf32> to vector<2x4x16xf32>
    %117 = vector.broadcast %112 : vector<1x4x16xf32> to vector<2x4x16xf32>
    %118 = arith.mulf %116, %117 : vector<2x4x16xf32>
    %119 = arith.subf %115, %118 : vector<2x4x16xf32>
    %120 = arith.addf %88, %119 : vector<2x4x16xf32>
    %121 = vector.broadcast %100 : vector<2x1x16xf32> to vector<2x4x16xf32>
    %122 = vector.broadcast %112 : vector<1x4x16xf32> to vector<2x4x16xf32>
    %123 = arith.mulf %121, %122 : vector<2x4x16xf32>
    %124 = vector.broadcast %104 : vector<2x1x16xf32> to vector<2x4x16xf32>
    %125 = vector.broadcast %108 : vector<1x4x16xf32> to vector<2x4x16xf32>
    %126 = arith.mulf %124, %125 : vector<2x4x16xf32>
    %127 = arith.addf %123, %126 : vector<2x4x16xf32>
    %128 = arith.addf %96, %127 : vector<2x4x16xf32>
    %c4_i32 = arith.constant 4 : i32
    %c0_62 = arith.constant 0 : index
    %c0_63 = arith.constant 0 : index
    %c0_64 = arith.constant 0 : index
    %c0_65 = arith.constant 0 : index
    %c0_66 = arith.constant 0 : index
    %129 = vector.load %arg4[%c0_62, %c0_63, %c0_64, %c0_65, %c0_66] : memref<1x2x2x4x16xf32, #tpu.memory_space<vmem>>, vector<1x1x2x4x16xf32>
    %130 = vector.shape_cast %129 : vector<1x1x2x4x16xf32> to vector<2x4x16xf32>
    %131 = vector.shape_cast %120 : vector<2x4x16xf32> to vector<1x1x2x4x16xf32>
    tpu.vector_store %arg4[%c0_62, %c0_63, %c0_64, %c0_65, %c0_66], %131 {strides = array<i32>} : memref<1x2x2x4x16xf32, #tpu.memory_space<vmem>>, vector<1x1x2x4x16xf32>,
    %c0_67 = arith.constant 0 : index
    %c1_68 = arith.constant 1 : index
    %c0_69 = arith.constant 0 : index
    %c0_70 = arith.constant 0 : index
    %c0_71 = arith.constant 0 : index
    %132 = vector.load %arg4[%c0_67, %c1_68, %c0_69, %c0_70, %c0_71] : memref<1x2x2x4x16xf32, #tpu.memory_space<vmem>>, vector<1x1x2x4x16xf32>
    %133 = vector.shape_cast %132 : vector<1x1x2x4x16xf32> to vector<2x4x16xf32>
    %134 = vector.shape_cast %128 : vector<2x4x16xf32> to vector<1x1x2x4x16xf32>
    tpu.vector_store %arg4[%c0_67, %c1_68, %c0_69, %c0_70, %c0_71], %134 {strides = array<i32>} : memref<1x2x2x4x16xf32, #tpu.memory_space<vmem>>, vector<1x1x2x4x16xf32>,
    return
  }
  func.func @transform_0(%arg0: i32, %arg1: i32) -> (i32, i32, i32, i32, i32) {
    %c0_i32 = arith.constant 0 : i32
    %c0_i32_0 = arith.constant 0 : i32
    %c0_i32_1 = arith.constant 0 : i32
    %c0_i32_2 = arith.constant 0 : i32
    return %arg0, %c0_i32, %c0_i32_0, %c0_i32_1, %arg1 : i32, i32, i32, i32, i32
  }
  func.func @transform_1(%arg0: i32, %arg1: i32) -> (i32, i32, i32, i32, i32) {
    %c0_i32 = arith.constant 0 : i32
    %c0_i32_0 = arith.constant 0 : i32
    %c0_i32_1 = arith.constant 0 : i32
    %c0_i32_2 = arith.constant 0 : i32
    return %arg0, %c0_i32, %c0_i32_0, %c0_i32_1, %arg1 : i32, i32, i32, i32, i32
  }
  func.func @transform_2(%arg0: i32, %arg1: i32) -> (i32, i32, i32, i32, i32) {
    %c0_i32 = arith.constant 0 : i32
    %c0_i32_0 = arith.constant 0 : i32
    %c0_i32_1 = arith.constant 0 : i32
    %c0_i32_2 = arith.constant 0 : i32
    return %arg0, %c0_i32, %c0_i32_0, %c0_i32_1, %arg1 : i32, i32, i32, i32, i32
  }
}

</mosaic_0001>

<llo_original>
// kernel: squeeze.0
$region0: #{squeeze.0}
  %s0 = inlined_call_operand.vmem [shape: f32[1,1,2,4,16], index: 0, kind: input, shape index: {}]
  %s1 = inlined_call_operand.vmem [shape: f32[2,4,4,4], index: 1, kind: output, shape index: {}]
  $region1: #{squeeze.0} parent=0
    #allocation0 [shape = 'u8[32768]{0}', space=vmem, size = 0x8000, scoped, tag = 'scoped mem for output reshape']
    #allocation1 [shape = 'u8[8192]{0}', space=vmem, size = 0x2000, scoped, tag = 'scoped mem for input reshape']
    %s3 = ssub.s32 16, 1
    %s4 = scalar_lea.vmem %s0, 4
    %v5 = vld [vmem:[%s4] sm:%s3]
    %s6 = scalar_lea.vmem [#allocation1], 8
    %7 = vst [vmem:[%s6] sm:%s3] %v5
    %v8 = vld [vmem:[%s0] sm:%s3]
    %9 = vst [vmem:[#allocation1] sm:%s3] %v8
    %v10 = vld [vmem:[#allocation1] sm:$0xf]
    %vm11 = vcmask 31744
    %12 = vst.msk [vmem:[#allocation0] ss:$8 sm:$0xf] %vm11, %v10
    %s13 = scalar_lea.vmem [#allocation1], 8
    %v14 = vld [vmem:[%s13] sm:$0xf]
    %vm15 = vcmask 31744
    %s16 = scalar_lea.vmem [#allocation0], 32
    %17 = vst.msk [vmem:[%s16] ss:$8 sm:$0xf] %vm15, %v14
    %v18 = vld.sshfl [vmem:[#allocation1] sm:$0xff pattern:$0xba983210]
    %19 = vrot.lane.b32.xlu0 %v18, 124
    %v20 = vpop.permute.xlu0 %19
    %vm21 = vcmask 31744
    %s22 = scalar_lea.vmem [#allocation0], 1
    %23 = vst.msk [vmem:[%s22] ss:$8 sm:$0xf] %vm21, %v20
    %s24 = scalar_lea.vmem [#allocation0], 1
    %25 = vst.msk [vmem:[%s24] ss:$8 sm:$0xf0] %vm21, %v20
    %v26 = vld.sshfl [vmem:[#allocation1] sm:$0xff pattern:$0xba983210]
    %27 = vrot.lane.b32.xlu0 %v26, 120
    %v28 = vpop.permute.xlu0 %27
    %vm29 = vcmask 31744
    %s30 = scalar_lea.vmem [#allocation0], 2
    %31 = vst.msk [vmem:[%s30] ss:$8 sm:$0xf] %vm29, %v28
    %s32 = scalar_lea.vmem [#allocation0], 2
    %33 = vst.msk [vmem:[%s32] ss:$8 sm:$0xf0] %vm29, %v28
    %v34 = vld.sshfl [vmem:[#allocation1] sm:$0xff pattern:$0xba983210]
    %35 = vrot.lane.b32.xlu0 %v34, 116
    %v36 = vpop.permute.xlu0 %35
    %vm37 = vcmask 31744
    %s38 = scalar_lea.vmem [#allocation0], 3
    %39 = vst.msk [vmem:[%s38] ss:$8 sm:$0xf] %vm37, %v36
    %s40 = scalar_lea.vmem [#allocation0], 3
    %41 = vst.msk [vmem:[%s40] ss:$8 sm:$0xf0] %vm37, %v36
    %s43 = ssub.s32 16, 1
    %v44 = vld [vmem:[#allocation0] sm:%s43]
    %s46 = ssub.s32 16, 1
    %47 = vst [vmem:[%s1] sm:%s46] %v44
    %s48 = scalar_lea.vmem [#allocation0], 8
    %v49 = vld [vmem:[%s48] sm:%s43]
    %s51 = ssub.s32 16, 1
    %s52 = scalar_lea.vmem %s1, 4
    %53 = vst [vmem:[%s52] sm:%s51] %v49
    %s54 = scalar_lea.vmem [#allocation0], 16
    %v55 = vld [vmem:[%s54] sm:%s43]
    %s57 = ssub.s32 16, 1
    %s58 = scalar_lea.vmem %s1, 8
    %59 = vst [vmem:[%s58] sm:%s57] %v55
    %s60 = scalar_lea.vmem [#allocation0], 24
    %v61 = vld [vmem:[%s60] sm:%s43]
    %s63 = ssub.s32 16, 1
    %s64 = scalar_lea.vmem %s1, 12
    %65 = vst [vmem:[%s64] sm:%s63] %v61
    %s66 = scalar_lea.vmem [#allocation0], 32
    %v67 = vld [vmem:[%s66] sm:%s43]
    %s69 = ssub.s32 16, 1
    %s70 = scalar_lea.vmem %s1, 16
    %71 = vst [vmem:[%s70] sm:%s69] %v67
    %s72 = scalar_lea.vmem [#allocation0], 40
    %v73 = vld [vmem:[%s72] sm:%s43]
    %s75 = ssub.s32 16, 1
    %s76 = scalar_lea.vmem %s1, 20
    %77 = vst [vmem:[%s76] sm:%s75] %v73
    %s78 = scalar_lea.vmem [#allocation0], 48
    %v79 = vld [vmem:[%s78] sm:%s43]
    %s81 = ssub.s32 16, 1
    %s82 = scalar_lea.vmem %s1, 24
    %83 = vst [vmem:[%s82] sm:%s81] %v79
    %s84 = scalar_lea.vmem [#allocation0], 56
    %v85 = vld [vmem:[%s84] sm:%s43]
    %s87 = ssub.s32 16, 1
    %s88 = scalar_lea.vmem %s1, 28
    %89 = vst [vmem:[%s88] sm:%s87] %v85

// kernel: _spectral_conv2d_forward.1
$region0: #{_spectral_conv2d_forward.1}
  #allocation0 [shape = 'u32[]', space=smem, size = 0x4, offset = 0x4, fixed_abs, tag = 'smem constant byte address 0x4 - core index']
  #allocation1 [shape = 'u32[72,128]{1,0:T(1,128)}', space=vmem, size = 0x9000, scoped, tag = 'internal scratch']
  %s0 = inlined_call_operand.vmem [shape: f32[2,2,4,2,16], index: 0, kind: input, shape index: {}]
  %s1 = inlined_call_operand.vmem [shape: f32[2,2,4,4,16], index: 1, kind: input, shape index: {}]
  %s2 = inlined_call_operand.vmem [shape: f32[2,2,2,4,16], index: 2, kind: output, shape index: {}]
  %s3 = sld [smem:[#allocation0]]
  $region41: #{_spectral_conv2d_forward.1} parent=0
    _
  %s5 = ssub.s32 1, %s3
  %s6 = scalar_select 0, %s5, %s3
  loop: start=0, step=1, limit=4
  $region2: #{_spectral_conv2d_forward.1} parent=0 // loop_pre_header
    _
  $region3: #{_spectral_conv2d_forward.1} parent=0 // loop_header
    %s8 = sphi 0, %s12
    %p9 = scmp.ge.s32.totalorder %s8, 4
    %s15 = sphi 0, %s27
    %s16 = sphi 0, %s23
    %s17 = sphi 0, %s15
    %s18 = sphi 0, %s16
    %s19 = sphi 0, %s17
    %s20 = sphi 0, %s18
    %s32 = sphi 0, %s34
    %s35 = sphi 0, %s32
    %s36 = sphi 0, %s35
    %s52 = sphi 0, %s36
    %s60 = sphi 0, %s62
    %s63 = sphi 0, %s60
    %s64 = sphi 0, %s63
    %s80 = sphi 0, %s64
    %s88 = sphi 0, %s90
    %s91 = sphi 0, %s88
    %s92 = sphi 0, %s91
    %s108 = sphi 0, %s92
  $region4: #{_spectral_conv2d_forward.1} parent=0 // loop_header_branch
    %11 = sbr.rel (%p9) target = $region8
  $region5: #{_spectral_conv2d_forward.1} parent=0 // loop_body
    %s13 = ssub.s32 %s8, 1
    %s14 = ssub.s32 %s8, 2
    %s21 = sadd.s32 1, %s16
    %p22 = scmp.ge.s32.totalorder %s21, 1
    %s23 = scalar_select %p22, 0, %s21
    %s24 = sadd.s32 1, %s15
    %s25 = scalar_select %p22, %s24, %s15
    %p26 = scmp.ge.s32.totalorder %s25, 2
    %s27 = scalar_select %p26, 0, %s25
    %s28 = ssub.s32 %s15, %s27
    %s29 = ssub.s32 %s16, %s23
    %s30 = sor.u32 %s28, %s29
    %p31 = scmp.eq.s32.totalorder %s30, 0
    %s33 = sadd.s32 %s32, 1
    %s34 = scalar_select %p31, %s32, %s33
    %p37 = pneg %p31
    %p38 = scmp.eq.s32.totalorder %s8, 1
    %p39 = por %p37, %p38
    %p40 = scmp.ne.s32.totalorder %s32, %s35
    %p41 = scmp.eq.s32.totalorder %s8, 0
    %p42 = por %p40, %p41
    %p43 = scmp.ne.s32.totalorder %s32, %s35
    %p44 = scmp.eq.s32.totalorder %s13, 1
    %p45 = por %p43, %p44
    %p46 = scmp.ne.s32.totalorder %s35, %s36
    %p47 = scmp.eq.s32.totalorder %s13, 0
    %p48 = por %p46, %p47
    %p49 = scmp.ne.s32.totalorder %s35, %s36
    %p50 = scmp.eq.s32.totalorder %s14, 1
    %p51 = por %p49, %p50
    %p53 = scmp.ne.s32.totalorder %s36, %s52
    %p54 = scmp.eq.s32.totalorder %s14, 0
    %p55 = por %p53, %p54
    %s56 = ssub.s32 %s15, %s27
    %s57 = ssub.s32 %s16, %s23
    %s58 = sor.u32 %s56, %s57
    %p59 = scmp.eq.s32.totalorder %s58, 0
    %s61 = sadd.s32 %s60, 1
    %s62 = scalar_select %p59, %s60, %s61
    %p65 = pneg %p59
    %p66 = scmp.eq.s32.totalorder %s8, 1
    %p67 = por %p65, %p66
    %p68 = scmp.ne.s32.totalorder %s60, %s63
    %p69 = scmp.eq.s32.totalorder %s8, 0
    %p70 = por %p68, %p69
    %p71 = scmp.ne.s32.totalorder %s60, %s63
    %p72 = scmp.eq.s32.totalorder %s13, 1
    %p73 = por %p71, %p72
    %p74 = scmp.ne.s32.totalorder %s63, %s64
    %p75 = scmp.eq.s32.totalorder %s13, 0
    %p76 = por %p74, %p75
    %p77 = scmp.ne.s32.totalorder %s63, %s64
    %p78 = scmp.eq.s32.totalorder %s14, 1
    %p79 = por %p77, %p78
    %p81 = scmp.ne.s32.totalorder %s64, %s80
    %p82 = scmp.eq.s32.totalorder %s14, 0
    %p83 = por %p81, %p82
    %s84 = ssub.s32 %s15, %s27
    %s85 = ssub.s32 %s16, %s23
    %s86 = sor.u32 %s84, %s85
    %p87 = scmp.eq.s32.totalorder %s86, 0
    %s89 = sadd.s32 %s88, 1
    %s90 = scalar_select %p87, %s88, %s89
    %p93 = pneg %p87
    %p94 = scmp.eq.s32.totalorder %s8, 1
    %p95 = por %p93, %p94
    %p96 = scmp.ne.s32.totalorder %s88, %s91
    %p97 = scmp.eq.s32.totalorder %s8, 0
    %p98 = por %p96, %p97
    %p99 = scmp.ne.s32.totalorder %s88, %s91
    %p100 = scmp.eq.s32.totalorder %s13, 1
    %p101 = por %p99, %p100
    %p102 = scmp.ne.s32.totalorder %s91, %s92
    %p103 = scmp.eq.s32.totalorder %s13, 0
    %p104 = por %p102, %p103
    %p105 = scmp.ne.s32.totalorder %s91, %s92
    %p106 = scmp.eq.s32.totalorder %s14, 1
    %p107 = por %p105, %p106
    %p109 = scmp.ne.s32.totalorder %s92, %s108
    %p110 = scmp.eq.s32.totalorder %s14, 0
    %p111 = por %p109, %p110
    %p112 = scmp.le.s32.totalorder 1, %s8
    %p113 = scmp.lt.s32.totalorder %s8, 3
    %p114 = pnand %p112, %p113
    %p115 = pneg %p114
    // Predicated region
    $region9: #{_spectral_conv2d_forward.1} parent=5 // pred_check
      _
    $region10: #{_spectral_conv2d_forward.1} parent=5 // pred_check_branch
      %117 = sbr.rel (%p114) target = $region12
    $region11: #{_spectral_conv2d_forward.1} parent=5 // pred_region
      %s118 = ssub.s32 %s8, 1
    $region12: #{_spectral_conv2d_forward.1} parent=5 // pred_fallthru
      _
    %p119 = scmp.lt.s32.totalorder %s8, 2
    // Predicated region
    $region13: #{_spectral_conv2d_forward.1} parent=5 // pred_check
      %p120 = pneg %p119
    $region14: #{_spectral_conv2d_forward.1} parent=5 // pred_check_branch
      %122 = sbr.rel (%p120) target = $region16
    $region15: #{_spectral_conv2d_forward.1} parent=5 // pred_region
      // Predicated region
      $region17: #{_spectral_conv2d_forward.1} parent=15 // pred_check
        %p123 = pneg %p42
      $region18: #{_spectral_conv2d_forward.1} parent=15 // pred_check_branch
        %125 = sbr.rel (%p123) target = $region20
      $region19: #{_spectral_conv2d_forward.1} parent=15 // pred_region
        %p126 = scmp.lt.s32.totalorder %s15, 1
        %s127 = scalar_select %p126, %s15, 1
        %p128 = scmp.lt.s32.totalorder %s16, 0
        %s129 = scalar_select %p128, %s16, 0
        %s130 = smul.addr %s127, 8
        %s131 = sadd.s32 %s129, %s130
        %s132 = smul.addr %s131, 2
        %s133 = scalar_lea.vmem %s0, %s132
      $region20: #{_spectral_conv2d_forward.1} parent=15 // pred_fallthru
        _
      // Predicated region
      $region21: #{_spectral_conv2d_forward.1} parent=15 // pred_check
        %p134 = pneg %p70
      $region22: #{_spectral_conv2d_forward.1} parent=15 // pred_check_branch
        %136 = sbr.rel (%p134) target = $region24
      $region23: #{_spectral_conv2d_forward.1} parent=15 // pred_region
        %p137 = scmp.lt.s32.totalorder %s15, 1
        %s138 = scalar_select %p137, %s15, 1
        %p139 = scmp.lt.s32.totalorder %s16, 0
        %s140 = scalar_select %p139, %s16, 0
        %s141 = smul.addr %s138, 8
        %s142 = sadd.s32 %s140, %s141
        %s143 = smul.addr %s142, 4
        %s144 = scalar_lea.vmem %s1, %s143
      $region24: #{_spectral_conv2d_forward.1} parent=15 // pred_fallthru
        _
    $region16: #{_spectral_conv2d_forward.1} parent=5 // pred_fallthru
      _
    %p145 = scmp.le.s32.totalorder 1, %s8
    %p146 = scmp.lt.s32.totalorder %s8, 3
    %p147 = pnand %p145, %p146
    %p148 = pneg %p147
    // Predicated region
    $region25: #{_spectral_conv2d_forward.1} parent=5 // pred_check
      _
    $region26: #{_spectral_conv2d_forward.1} parent=5 // pred_check_branch
      %150 = sbr.rel (%p147) target = $region28
    $region27: #{_spectral_conv2d_forward.1} parent=5 // pred_region
      %s151 = ssub.s32 %s8, 1
      %p152 = scmp.lt.s32.totalorder %s17, 1
      %s153 = scalar_select %p152, %s17, 1
      %p154 = scmp.lt.s32.totalorder %s18, 0
      %s155 = scalar_select %p154, %s18, 0
      %s156 = smul.addr %s153, 8
      %s157 = sadd.s32 %s155, %s156
      %s158 = smul.addr %s157, 2
      %s159 = scalar_lea.vmem %s0, %s158
      %p160 = pneg %p48
      %p161 = pneg %p45
      %p162 = scmp.lt.s32.totalorder %s17, 1
      %s163 = scalar_select %p162, %s17, 1
      %p164 = scmp.lt.s32.totalorder %s18, 0
      %s165 = scalar_select %p164, %s18, 0
      %s166 = smul.addr %s163, 8
      %s167 = sadd.s32 %s165, %s166
      %s168 = smul.addr %s167, 4
      %s169 = scalar_lea.vmem %s1, %s168
      %p170 = pneg %p76
      %p171 = pneg %p73
      %p172 = pneg %p104
      %p173 = pneg %p101
      %p174 = scmp.lt.s32.totalorder %s17, 1
      %s175 = scalar_select %p174, %s17, 1
      %p176 = scmp.lt.s32.totalorder %s18, 0
      %s177 = scalar_select %p176, %s18, 0
      %s178 = smul.addr %s175, 4
      %s179 = sadd.s32 %s177, %s178
      %s180 = smul.addr %s179, 4
      %s181 = scalar_lea.vmem %s2, %s180
      %p182 = scmp.lt.s32.totalorder %s17, 1
      %s183 = scalar_select %p182, %s17, 1
      %p184 = scmp.lt.s32.totalorder %s18, 0
      %s185 = scalar_select %p184, %s18, 0
      %s186 = smul.addr %s183, 8
      %s187 = sadd.s32 %s185, %s186
      %s188 = smul.addr %s187, 2
      %s189 = scalar_lea.vmem %s0, %s188
      %p190 = scmp.lt.s32.totalorder %s17, 1
      %s191 = scalar_select %p190, %s17, 1
      %p192 = scmp.lt.s32.totalorder %s18, 0
      %s193 = scalar_select %p192, %s18, 0
      %s194 = smul.addr %s191, 8
      %s195 = sadd.s32 %s193, %s194
      %s196 = smul.addr %s195, 4
      %s197 = scalar_lea.vmem %s1, %s196
      %p198 = scmp.lt.s32.totalorder %s17, 1
      %s199 = scalar_select %p198, %s17, 1
      %p200 = scmp.lt.s32.totalorder %s18, 0
      %s201 = scalar_select %p200, %s18, 0
      %s202 = smul.addr %s199, 4
      %s203 = sadd.s32 %s201, %s202
      %s204 = smul.addr %s203, 4
      %s205 = scalar_lea.vmem %s2, %s204
      %v206 = vld [vmem:[%s189] sm:$0x3]
      %v208 = vrot.slane %v206, 1
      %s209 = scalar_lea.vmem %s189, 8
      %v210 = vld [vmem:[%s209] sm:$0x3]
      %v212 = vrot.slane %v210, 1
      %v213 = vld [vmem:[%s197] sm:$0xf]
      %s214 = scalar_lea.vmem %s197, 16
      %v215 = vld [vmem:[%s214] sm:$0xf]
      %v216 = vperm.slane %v206, 0
      %v217 = vperm.slane %v208, 0
      %v220 = vmul.f32 %v216, %v213
      %v221 = vmul.f32 %v217, %v213
      %v222 = vperm.slane %v210, 0
      %v223 = vperm.slane %v212, 0
      %v226 = vmul.f32 %v222, %v215
      %v227 = vmul.f32 %v223, %v215
      %v228 = vsub.f32 %v220, %v226
      %v229 = vsub.f32 %v221, %v227
      %v230 = vadd.f32 %v228, 0.0
      %v231 = vadd.f32 %v229, 0.0
      %v232 = vmul.f32 %v216, %v215
      %v233 = vmul.f32 %v217, %v215
      %v234 = vmul.f32 %v222, %v213
      %v235 = vmul.f32 %v223, %v213
      %v236 = vadd.f32 %v232, %v234
      %v237 = vadd.f32 %v233, %v235
      %v238 = vadd.f32 %v236, 0.0
      %v239 = vadd.f32 %v237, 0.0
      %s240 = scalar_lea.vmem %s189, 2
      %v241 = vld [vmem:[%s240] sm:$0x3]
      %v243 = vrot.slane %v241, 1
      %s244 = scalar_lea.vmem %s189, 10
      %v245 = vld [vmem:[%s244] sm:$0x3]
      %v247 = vrot.slane %v245, 1
      %s248 = scalar_lea.vmem %s197, 4
      %v249 = vld [vmem:[%s248] sm:$0xf]
      %s250 = scalar_lea.vmem %s197, 20
      %v251 = vld [vmem:[%s250] sm:$0xf]
      %v252 = vperm.slane %v241, 0
      %v253 = vperm.slane %v243, 0
      %v256 = vmul.f32 %v252, %v249
      %v257 = vmul.f32 %v253, %v249
      %v258 = vperm.slane %v245, 0
      %v259 = vperm.slane %v247, 0
      %v262 = vmul.f32 %v258, %v251
      %v263 = vmul.f32 %v259, %v251
      %v264 = vsub.f32 %v256, %v262
      %v265 = vsub.f32 %v257, %v263
      %v266 = vadd.f32 %v230, %v264
      %v267 = vadd.f32 %v231, %v265
      %v268 = vmul.f32 %v252, %v251
      %v269 = vmul.f32 %v253, %v251
      %v270 = vmul.f32 %v258, %v249
      %v271 = vmul.f32 %v259, %v249
      %v272 = vadd.f32 %v268, %v270
      %v273 = vadd.f32 %v269, %v271
      %v274 = vadd.f32 %v238, %v272
      %v275 = vadd.f32 %v239, %v273
      %s276 = scalar_lea.vmem %s189, 4
      %v277 = vld [vmem:[%s276] sm:$0x3]
      %v279 = vrot.slane %v277, 1
      %s280 = scalar_lea.vmem %s189, 12
      %v281 = vld [vmem:[%s280] sm:$0x3]
      %v283 = vrot.slane %v281, 1
      %s284 = scalar_lea.vmem %s197, 8
      %v285 = vld [vmem:[%s284] sm:$0xf]
      %s286 = scalar_lea.vmem %s197, 24
      %v287 = vld [vmem:[%s286] sm:$0xf]
      %v288 = vperm.slane %v277, 0
      %v289 = vperm.slane %v279, 0
      %v292 = vmul.f32 %v288, %v285
      %v293 = vmul.f32 %v289, %v285
      %v294 = vperm.slane %v281, 0
      %v295 = vperm.slane %v283, 0
      %v298 = vmul.f32 %v294, %v287
      %v299 = vmul.f32 %v295, %v287
      %v300 = vsub.f32 %v292, %v298
      %v301 = vsub.f32 %v293, %v299
      %v302 = vadd.f32 %v266, %v300
      %v303 = vadd.f32 %v267, %v301
      %v304 = vmul.f32 %v288, %v287
      %v305 = vmul.f32 %v289, %v287
      %v306 = vmul.f32 %v294, %v285
      %v307 = vmul.f32 %v295, %v285
      %v308 = vadd.f32 %v304, %v306
      %v309 = vadd.f32 %v305, %v307
      %v310 = vadd.f32 %v274, %v308
      %v311 = vadd.f32 %v275, %v309
      %s312 = scalar_lea.vmem %s189, 6
      %v313 = vld [vmem:[%s312] sm:$0x3]
      %v315 = vrot.slane %v313, 1
      %s316 = scalar_lea.vmem %s189, 14
      %v317 = vld [vmem:[%s316] sm:$0x3]
      %v319 = vrot.slane %v317, 1
      %s320 = scalar_lea.vmem %s197, 12
      %v321 = vld [vmem:[%s320] sm:$0xf]
      %s322 = scalar_lea.vmem %s197, 28
      %v323 = vld [vmem:[%s322] sm:$0xf]
      %v324 = vperm.slane %v313, 0
      %v325 = vperm.slane %v315, 0
      %v328 = vmul.f32 %v324, %v321
      %v329 = vmul.f32 %v325, %v321
      %v330 = vperm.slane %v317, 0
      %v331 = vperm.slane %v319, 0
      %v334 = vmul.f32 %v330, %v323
      %v335 = vmul.f32 %v331, %v323
      %v336 = vsub.f32 %v328, %v334
      %v337 = vsub.f32 %v329, %v335
      %v338 = vadd.f32 %v302, %v336
      %v339 = vadd.f32 %v303, %v337
      %v340 = vmul.f32 %v324, %v323
      %v341 = vmul.f32 %v325, %v323
      %v342 = vmul.f32 %v330, %v321
      %v343 = vmul.f32 %v331, %v321
      %v344 = vadd.f32 %v340, %v342
      %v345 = vadd.f32 %v341, %v343
      %v346 = vadd.f32 %v310, %v344
      %v347 = vadd.f32 %v311, %v345
      %vm348 = vcmask 125952
      %349 = vst.msk [vmem:[%s205] sm:$0xf] %vm348, %v338
      %350 = vst.msk [vmem:[%s205 + $0x4] sm:$0xf] %vm348, %v339
      %s351 = scalar_lea.vmem %s205, 8
      %352 = vst.msk [vmem:[%s351] sm:$0xf] %vm348, %v346
      %353 = vst.msk [vmem:[%s351 + $0x4] sm:$0xf] %vm348, %v347
      %p354 = scmp.lt.s32.totalorder %s17, 1
      %s355 = scalar_select %p354, %s17, 1
      %p356 = scmp.lt.s32.totalorder %s18, 0
      %s357 = scalar_select %p356, %s18, 0
      %s358 = smul.addr %s355, 4
      %s359 = sadd.s32 %s357, %s358
      %s360 = smul.addr %s359, 4
      %s361 = scalar_lea.vmem %s2, %s360
      // Predicated region
      $region29: #{_spectral_conv2d_forward.1} parent=27 // pred_check
        %p362 = pneg %p101
      $region30: #{_spectral_conv2d_forward.1} parent=27 // pred_check_branch
        %364 = sbr.rel (%p362) target = $region32
      $region31: #{_spectral_conv2d_forward.1} parent=27 // pred_region
        _
      $region32: #{_spectral_conv2d_forward.1} parent=27 // pred_fallthru
        _
    $region28: #{_spectral_conv2d_forward.1} parent=5 // pred_fallthru
      _
    %p365 = scmp.le.s32.totalorder 2, %s8
    // Predicated region
    $region33: #{_spectral_conv2d_forward.1} parent=5 // pred_check
      %p366 = pneg %p365
    $region34: #{_spectral_conv2d_forward.1} parent=5 // pred_check_branch
      %368 = sbr.rel (%p366) target = $region36
    $region35: #{_spectral_conv2d_forward.1} parent=5 // pred_region
      %s369 = ssub.s32 %s8, 2
      // Predicated region
      $region37: #{_spectral_conv2d_forward.1} parent=35 // pred_check
        %p370 = pneg %p107
      $region38: #{_spectral_conv2d_forward.1} parent=35 // pred_check_branch
        %372 = sbr.rel (%p370) target = $region40
      $region39: #{_spectral_conv2d_forward.1} parent=35 // pred_region
        %p373 = scmp.lt.s32.totalorder %s19, 1
        %s374 = scalar_select %p373, %s19, 1
        %p375 = scmp.lt.s32.totalorder %s20, 0
        %s376 = scalar_select %p375, %s20, 0
        %s377 = smul.addr %s374, 4
        %s378 = sadd.s32 %s376, %s377
        %s379 = smul.addr %s378, 4
        %s380 = scalar_lea.vmem %s2, %s379
      $region40: #{_spectral_conv2d_forward.1} parent=35 // pred_fallthru
        _
    $region36: #{_spectral_conv2d_forward.1} parent=5 // pred_fallthru
      _
  $region6: #{_spectral_conv2d_forward.1} parent=0 // loop_footer
    %s12 = sadd.s32 1, %s8
  $region7: #{_spectral_conv2d_forward.1} parent=0 // loop_footer_branch
    %7 = sbr.rel target = $region3
  $region8: #{_spectral_conv2d_forward.1} parent=0 // loop_exit
    _

// kernel: reverse.0
$region0: #{reverse.0}
  %s0 = inlined_call_operand.vmem [shape: f32[2,4,16,7], index: 0, kind: input, shape index: {}]
  %s1 = inlined_call_operand.vmem [shape: f32[2,4,16,7], index: 1, kind: output, shape index: {}]
  $region1: #{reverse.0} parent=0
    #allocation0 [shape = 'u8[65536]{0}', space=vmem, size = 0x10000, scoped, tag = 'operand span for operand 0']
    #allocation1 [shape = 'u8[32768]{0}', space=vmem, size = 0x8000, scoped, tag = 'operand span for operand 1']
    %s2 = scalar_lea.vmem [#allocation0], 8
    // Predicated region
    $region2: #{reverse.0} parent=1 // pred_check
      _
    $region3: #{reverse.0} parent=1 // pred_check_branch
      %4 = sbr.rel (0) target = $region5
    $region4: #{reverse.0} parent=1 // pred_region
      // Predicated region
      $region6: #{reverse.0} parent=4 // pred_check
        _
      $region7: #{reverse.0} parent=4 // pred_check_branch
        %6 = sbr.rel (0) target = $region9
      $region8: #{reverse.0} parent=4 // pred_region
        // Predicated region
        $region21: #{reverse.0} parent=8 // pred_check
          _
        $region22: #{reverse.0} parent=8 // pred_check_branch
          %36 = sbr.rel (0) target = $region24
        $region23: #{reverse.0} parent=8 // pred_region
          loop: start=0, step=1, limit=1
          $region25: #{reverse.0} parent=23 // loop_pre_header
            _
          $region26: #{reverse.0} parent=23 // loop_header
            %s38 = sphi 0, %s42
            %p39 = scmp.ge.s32.totalorder %s38, 1
            %s43 = sphi %s0, %s0
            %s44 = sphi %s2, %s2
          $region27: #{reverse.0} parent=23 // loop_header_branch
            %41 = sbr.rel (%p39) target = $region31
          $region28: #{reverse.0} parent=23 // loop_body
            %v45 = vld [vmem:[%s43] sm:$0xff]
            %46 = vst [vmem:[%s44] sm:$0xff] %v45
            %v47 = vld [vmem:[%s43 + $0x8] sm:$0xff]
            %48 = vst [vmem:[%s44 + $0x10] sm:$0xff] %v47
            %v49 = vld [vmem:[%s43 + $0x10] sm:$0xff]
            %50 = vst [vmem:[%s44 + $0x20] sm:$0xff] %v49
            %v51 = vld [vmem:[%s43 + $0x18] sm:$0xff]
            %52 = vst [vmem:[%s44 + $0x30] sm:$0xff] %v51
            %v53 = vld [vmem:[%s43 + $0x20] sm:$0xff]
            %54 = vst [vmem:[%s44 + $0x40] sm:$0xff] %v53
            %v55 = vld [vmem:[%s43 + $0x28] sm:$0xff]
            %56 = vst [vmem:[%s44 + $0x50] sm:$0xff] %v55
            %v57 = vld [vmem:[%s43 + $0x30] sm:$0xff]
            %58 = vst [vmem:[%s44 + $0x60] sm:$0xff] %v57
            %v59 = vld [vmem:[%s43 + $0x38] sm:$0xff]
            %60 = vst [vmem:[%s44 + $0x70] sm:$0xff] %v59
          $region29: #{reverse.0} parent=23 // loop_footer
            %s42 = sadd.s32 1, %s38
          $region30: #{reverse.0} parent=23 // loop_footer_branch
            %37 = sbr.rel target = $region26
          $region31: #{reverse.0} parent=23 // loop_exit
            _
        $region24: #{reverse.0} parent=8 // pred_fallthru
          _
        // Predicated region
        $region32: #{reverse.0} parent=8 // pred_check
          _
        $region33: #{reverse.0} parent=8 // pred_check_branch
          %62 = sbr.rel target = $region35
        $region34: #{reverse.0} parent=8 // pred_region
          _
        $region35: #{reverse.0} parent=8 // pred_fallthru
          _
      $region9: #{reverse.0} parent=4 // pred_fallthru
        _
      // Predicated region
      $region10: #{reverse.0} parent=4 // pred_check
        _
      $region11: #{reverse.0} parent=4 // pred_check_branch
        %8 = sbr.rel target = $region13
      $region12: #{reverse.0} parent=4 // pred_region
        %s10 = ssub.s32 256, 1
        loop: start=0, step=1, limit=1
        $region14: #{reverse.0} parent=12 // loop_pre_header
          _
        $region15: #{reverse.0} parent=12 // loop_header
          %s12 = sphi 0, %s16
          %p13 = scmp.ge.s32.totalorder %s12, 1
          %s17 = sphi %s0, %s0
          %s18 = sphi %s2, %s2
        $region16: #{reverse.0} parent=12 // loop_header_branch
          %15 = sbr.rel (%p13) target = $region20
        $region17: #{reverse.0} parent=12 // loop_body
          %v19 = vld [vmem:[%s17] sm:%s10]
          %20 = vst [vmem:[%s18] sm:%s10] %v19
          %v21 = vld [vmem:[%s17 + $0x8] sm:%s10]
          %22 = vst [vmem:[%s18 + $0x10] sm:%s10] %v21
          %v23 = vld [vmem:[%s17 + $0x10] sm:%s10]
          %24 = vst [vmem:[%s18 + $0x20] sm:%s10] %v23
          %v25 = vld [vmem:[%s17 + $0x18] sm:%s10]
          %26 = vst [vmem:[%s18 + $0x30] sm:%s10] %v25
          %v27 = vld [vmem:[%s17 + $0x20] sm:%s10]
          %28 = vst [vmem:[%s18 + $0x40] sm:%s10] %v27
          %v29 = vld [vmem:[%s17 + $0x28] sm:%s10]
          %30 = vst [vmem:[%s18 + $0x50] sm:%s10] %v29
          %v31 = vld [vmem:[%s17 + $0x30] sm:%s10]
          %32 = vst [vmem:[%s18 + $0x60] sm:%s10] %v31
          %v33 = vld [vmem:[%s17 + $0x38] sm:%s10]
          %34 = vst [vmem:[%s18 + $0x70] sm:%s10] %v33
        $region18: #{reverse.0} parent=12 // loop_footer
          %s16 = sadd.s32 1, %s12
        $region19: #{reverse.0} parent=12 // loop_footer_branch
          %11 = sbr.rel target = $region15
        $region20: #{reverse.0} parent=12 // loop_exit
          _
      $region13: #{reverse.0} parent=4 // pred_fallthru
        _
    $region5: #{reverse.0} parent=1 // pred_fallthru
      _
    %63 = vnop
    %s64 = scalar_lea.vmem [#allocation0], 7
    %v65 = vld [vmem:[%s64] ss:$-1 sm:$0xff]
    %v66 = vrot.slane %v65, 1
    %67 = vst [vmem:[#allocation1] sm:$0xff] %v66
    %s68 = scalar_lea.vmem [#allocation0], 8
    %s69 = scalar_lea.vmem %s68, 7 [#allocation0]
    %v70 = vld [vmem:[%s69] ss:$-1 sm:$0xff]
    %v71 = vrot.slane %v70, 1
    %v72 = vlaneseq
    %v73 = vshrl.u32 %v72, 7
    %vm74 = vcmp.lt.s32.totalorder %v73, 7
    %75 = vst.msk [vmem:[#allocation1] sm:$0xff] %vm74, %v71
    %s76 = scalar_lea.vmem [#allocation1], 8
    %s77 = scalar_lea.vmem [#allocation0], 16
    %s78 = scalar_lea.vmem %s77, 7 [#allocation0]
    %v79 = vld [vmem:[%s78] ss:$-1 sm:$0xff]
    %v80 = vrot.slane %v79, 1
    %81 = vst [vmem:[%s76] sm:$0xff] %v80
    %s82 = scalar_lea.vmem %s77, 8 [#allocation0]
    %s83 = scalar_lea.vmem %s82, 7 [#allocation0]
    %v84 = vld [vmem:[%s83] ss:$-1 sm:$0xff]
    %v85 = vrot.slane %v84, 1
    %v86 = vlaneseq
    %v87 = vshrl.u32 %v86, 7
    %vm88 = vcmp.lt.s32.totalorder %v87, 7
    %89 = vst.msk [vmem:[%s76] sm:$0xff] %vm88, %v85
    %s90 = scalar_lea.vmem [#allocation1], 16
    %s91 = scalar_lea.vmem [#allocation0], 32
    %s92 = scalar_lea.vmem %s91, 7 [#allocation0]
    %v93 = vld [vmem:[%s92] ss:$-1 sm:$0xff]
    %v94 = vrot.slane %v93, 1
    %95 = vst [vmem:[%s90] sm:$0xff] %v94
    %s96 = scalar_lea.vmem %s91, 8 [#allocation0]
    %s97 = scalar_lea.vmem %s96, 7 [#allocation0]
    %v98 = vld [vmem:[%s97] ss:$-1 sm:$0xff]
    %v99 = vrot.slane %v98, 1
    %v100 = vlaneseq
    %v101 = vshrl.u32 %v100, 7
    %vm102 = vcmp.lt.s32.totalorder %v101, 7
    %103 = vst.msk [vmem:[%s90] sm:$0xff] %vm102, %v99
    %s104 = scalar_lea.vmem [#allocation1], 24
    %s105 = scalar_lea.vmem [#allocation0], 48
    %s106 = scalar_lea.vmem %s105, 7 [#allocation0]
    %v107 = vld [vmem:[%s106] ss:$-1 sm:$0xff]
    %v108 = vrot.slane %v107, 1
    %109 = vst [vmem:[%s104] sm:$0xff] %v108
    %s110 = scalar_lea.vmem %s105, 8 [#allocation0]
    %s111 = scalar_lea.vmem %s110, 7 [#allocation0]
    %v112 = vld [vmem:[%s111] ss:$-1 sm:$0xff]
    %v113 = vrot.slane %v112, 1
    %v114 = vlaneseq
    %v115 = vshrl.u32 %v114, 7
    %vm116 = vcmp.lt.s32.totalorder %v115, 7
    %117 = vst.msk [vmem:[%s104] sm:$0xff] %vm116, %v113
    %s118 = scalar_lea.vmem [#allocation1], 32
    %s119 = scalar_lea.vmem [#allocation0], 64
    %s120 = scalar_lea.vmem %s119, 7 [#allocation0]
    %v121 = vld [vmem:[%s120] ss:$-1 sm:$0xff]
    %v122 = vrot.slane %v121, 1
    %123 = vst [vmem:[%s118] sm:$0xff] %v122
    %s124 = scalar_lea.vmem %s119, 8 [#allocation0]
    %s125 = scalar_lea.vmem %s124, 7 [#allocation0]
    %v126 = vld [vmem:[%s125] ss:$-1 sm:$0xff]
    %v127 = vrot.slane %v126, 1
    %v128 = vlaneseq
    %v129 = vshrl.u32 %v128, 7
    %vm130 = vcmp.lt.s32.totalorder %v129, 7
    %131 = vst.msk [vmem:[%s118] sm:$0xff] %vm130, %v127
    %s132 = scalar_lea.vmem [#allocation1], 40
    %s133 = scalar_lea.vmem [#allocation0], 80
    %s134 = scalar_lea.vmem %s133, 7 [#allocation0]
    %v135 = vld [vmem:[%s134] ss:$-1 sm:$0xff]
    %v136 = vrot.slane %v135, 1
    %137 = vst [vmem:[%s132] sm:$0xff] %v136
    %s138 = scalar_lea.vmem %s133, 8 [#allocation0]
    %s139 = scalar_lea.vmem %s138, 7 [#allocation0]
    %v140 = vld [vmem:[%s139] ss:$-1 sm:$0xff]
    %v141 = vrot.slane %v140, 1
    %v142 = vlaneseq
    %v143 = vshrl.u32 %v142, 7
    %vm144 = vcmp.lt.s32.totalorder %v143, 7
    %145 = vst.msk [vmem:[%s132] sm:$0xff] %vm144, %v141
    %s146 = scalar_lea.vmem [#allocation1], 48
    %s147 = scalar_lea.vmem [#allocation0], 96
    %s148 = scalar_lea.vmem %s147, 7 [#allocation0]
    %v149 = vld [vmem:[%s148] ss:$-1 sm:$0xff]
    %v150 = vrot.slane %v149, 1
    %151 = vst [vmem:[%s146] sm:$0xff] %v150
    %s152 = scalar_lea.vmem %s147, 8 [#allocation0]
    %s153 = scalar_lea.vmem %s152, 7 [#allocation0]
    %v154 = vld [vmem:[%s153] ss:$-1 sm:$0xff]
    %v155 = vrot.slane %v154, 1
    %v156 = vlaneseq
    %v157 = vshrl.u32 %v156, 7
    %vm158 = vcmp.lt.s32.totalorder %v157, 7
    %159 = vst.msk [vmem:[%s146] sm:$0xff] %vm158, %v155
    %s160 = scalar_lea.vmem [#allocation1], 56
    %s161 = scalar_lea.vmem [#allocation0], 112
    %s162 = scalar_lea.vmem %s161, 7 [#allocation0]
    %v163 = vld [vmem:[%s162] ss:$-1 sm:$0xff]
    %v164 = vrot.slane %v163, 1
    %165 = vst [vmem:[%s160] sm:$0xff] %v164
    %s166 = scalar_lea.vmem %s161, 8 [#allocation0]
    %s167 = scalar_lea.vmem %s166, 7 [#allocation0]
    %v168 = vld [vmem:[%s167] ss:$-1 sm:$0xff]
    %v169 = vrot.slane %v168, 1
    %v170 = vlaneseq
    %v171 = vshrl.u32 %v170, 7
    %vm172 = vcmp.lt.s32.totalorder %v171, 7
    %173 = vst.msk [vmem:[%s160] sm:$0xff] %vm172, %v169
    // Predicated region
    $region36: #{reverse.0} parent=1 // pred_check
      _
    $region37: #{reverse.0} parent=1 // pred_check_branch
      %175 = sbr.rel (0) target = $region39
    $region38: #{reverse.0} parent=1 // pred_region
      // Predicated region
      $region40: #{reverse.0} parent=38 // pred_check
        _
      $region41: #{reverse.0} parent=38 // pred_check_branch
        %177 = sbr.rel (0) target = $region43
      $region42: #{reverse.0} parent=38 // pred_region
        // Predicated region
        $region55: #{reverse.0} parent=42 // pred_check
          _
        $region56: #{reverse.0} parent=42 // pred_check_branch
          %207 = sbr.rel (0) target = $region58
        $region57: #{reverse.0} parent=42 // pred_region
          loop: start=0, step=1, limit=1
          $region59: #{reverse.0} parent=57 // loop_pre_header
            _
          $region60: #{reverse.0} parent=57 // loop_header
            %s209 = sphi 0, %s213
            %p210 = scmp.ge.s32.totalorder %s209, 1
            %s214 = sphi [#allocation1], [#allocation1]
            %s215 = sphi %s1, %s1
          $region61: #{reverse.0} parent=57 // loop_header_branch
            %212 = sbr.rel (%p210) target = $region65
          $region62: #{reverse.0} parent=57 // loop_body
            %v216 = vld [vmem:[%s214] sm:$0xff]
            %217 = vst [vmem:[%s215] sm:$0xff] %v216
            %v218 = vld [vmem:[%s214 + $0x8] sm:$0xff]
            %219 = vst [vmem:[%s215 + $0x8] sm:$0xff] %v218
            %v220 = vld [vmem:[%s214 + $0x10] sm:$0xff]
            %221 = vst [vmem:[%s215 + $0x10] sm:$0xff] %v220
            %v222 = vld [vmem:[%s214 + $0x18] sm:$0xff]
            %223 = vst [vmem:[%s215 + $0x18] sm:$0xff] %v222
            %v224 = vld [vmem:[%s214 + $0x20] sm:$0xff]
            %225 = vst [vmem:[%s215 + $0x20] sm:$0xff] %v224
            %v226 = vld [vmem:[%s214 + $0x28] sm:$0xff]
            %227 = vst [vmem:[%s215 + $0x28] sm:$0xff] %v226
            %v228 = vld [vmem:[%s214 + $0x30] sm:$0xff]
            %229 = vst [vmem:[%s215 + $0x30] sm:$0xff] %v228
            %v230 = vld [vmem:[%s214 + $0x38] sm:$0xff]
            %231 = vst [vmem:[%s215 + $0x38] sm:$0xff] %v230
          $region63: #{reverse.0} parent=57 // loop_footer
            %s213 = sadd.s32 1, %s209
          $region64: #{reverse.0} parent=57 // loop_footer_branch
            %208 = sbr.rel target = $region60
          $region65: #{reverse.0} parent=57 // loop_exit
            _
        $region58: #{reverse.0} parent=42 // pred_fallthru
          _
        // Predicated region
        $region66: #{reverse.0} parent=42 // pred_check
          _
        $region67: #{reverse.0} parent=42 // pred_check_branch
          %233 = sbr.rel target = $region69
        $region68: #{reverse.0} parent=42 // pred_region
          _
        $region69: #{reverse.0} parent=42 // pred_fallthru
          _
      $region43: #{reverse.0} parent=38 // pred_fallthru
        _
      // Predicated region
      $region44: #{reverse.0} parent=38 // pred_check
        _
      $region45: #{reverse.0} parent=38 // pred_check_branch
        %179 = sbr.rel target = $region47
      $region46: #{reverse.0} parent=38 // pred_region
        %s181 = ssub.s32 256, 1
        loop: start=0, step=1, limit=1
        $region48: #{reverse.0} parent=46 // loop_pre_header
          _
        $region49: #{reverse.0} parent=46 // loop_header
          %s183 = sphi 0, %s187
          %p184 = scmp.ge.s32.totalorder %s183, 1
          %s188 = sphi [#allocation1], [#allocation1]
          %s189 = sphi %s1, %s1
        $region50: #{reverse.0} parent=46 // loop_header_branch
          %186 = sbr.rel (%p184) target = $region54
        $region51: #{reverse.0} parent=46 // loop_body
          %v190 = vld [vmem:[%s188] sm:%s181]
          %191 = vst [vmem:[%s189] sm:%s181] %v190
          %v192 = vld [vmem:[%s188 + $0x8] sm:%s181]
          %193 = vst [vmem:[%s189 + $0x8] sm:%s181] %v192
          %v194 = vld [vmem:[%s188 + $0x10] sm:%s181]
          %195 = vst [vmem:[%s189 + $0x10] sm:%s181] %v194
          %v196 = vld [vmem:[%s188 + $0x18] sm:%s181]
          %197 = vst [vmem:[%s189 + $0x18] sm:%s181] %v196
          %v198 = vld [vmem:[%s188 + $0x20] sm:%s181]
          %199 = vst [vmem:[%s189 + $0x20] sm:%s181] %v198
          %v200 = vld [vmem:[%s188 + $0x28] sm:%s181]
          %201 = vst [vmem:[%s189 + $0x28] sm:%s181] %v200
          %v202 = vld [vmem:[%s188 + $0x30] sm:%s181]
          %203 = vst [vmem:[%s189 + $0x30] sm:%s181] %v202
          %v204 = vld [vmem:[%s188 + $0x38] sm:%s181]
          %205 = vst [vmem:[%s189 + $0x38] sm:%s181] %v204
        $region52: #{reverse.0} parent=46 // loop_footer
          %s187 = sadd.s32 1, %s183
        $region53: #{reverse.0} parent=46 // loop_footer_branch
          %182 = sbr.rel target = $region49
        $region54: #{reverse.0} parent=46 // loop_exit
          _
      $region47: #{reverse.0} parent=38 // pred_fallthru
        _
    $region39: #{reverse.0} parent=1 // pred_fallthru
      _
    %234 = vnop

</llo_original>
